<compile_context>
chip_gen: v6e
topology: v6e:2x2x1
jax: 0.10.0
libtpu: 0.0.40
codegen_flags: <defaults>
</compile_context>

<pallas_src>
import functools
import math

import jax
import jax.numpy as jnp
from jax.experimental import pallas as pl
from jax.experimental.pallas import tpu as pltpu

_MASK_VALUE = float(jnp.finfo(jnp.float32).min)


# ----------------------------------------------------------------------------
# Generation-aware tiling / VMEM configuration
# ----------------------------------------------------------------------------
@functools.lru_cache(maxsize=1)
def _hw_config():
    try:
        vmem_bytes = int(pltpu.get_tpu_info().vmem_capacity_bytes)
    except Exception:
        vmem_bytes = 64 * 1024 * 1024  # conservative (v7x-sized) fallback
    if vmem_bytes >= 96 * 1024 * 1024:
        # v5e / v6e (128 MiB VMEM): big tiles push arithmetic intensity past the
        # HBM/MXU ridge (~683 FLOP/B for 1024x2048), weights re-streamed less.
        return dict(tm=1024, tn=2048, tk=512, vmem_limit=96 * 1024 * 1024)
    # v7x: 64 MiB VMEM but 3.2 TB/s HBM -> 512x1024 is already compute-bound.
    return dict(tm=512, tn=1024, tk=512, vmem_limit=48 * 1024 * 1024)


def _round_up(x, m):
    return pl.cdiv(x, m) * m


def _pick_tile(full, target, align):
    """Largest tile <= target that divides `full` and is a multiple of `align`,
    falling back to the full extent (legal: block == full array dim)."""
    if full <= target:
        return full
    t = (target // align) * align
    while t >= align:
        if full % t == 0:
            return t
        t -= align
    return full


# ----------------------------------------------------------------------------
# Tiled matmul with K-accumulation (fused QKV projection and O projection)
# ----------------------------------------------------------------------------
def _matmul_kernel(x_ref, w_ref, o_ref, acc_ref):
    @pl.when(pl.program_id(2) == 0)
    def _():
        acc_ref[...] = jnp.zeros(acc_ref.shape, dtype=jnp.float32)

    acc_ref[...] += jnp.dot(x_ref[...], w_ref[...],
                            preferred_element_type=jnp.float32)

    @pl.when(pl.program_id(2) == pl.num_programs(2) - 1)
    def _():
        o_ref[...] = acc_ref[...].astype(o_ref.dtype)


def linear_pallas(x2d, w, *, tm=None, tn=None, tk=None):
    """x2d: (M, K) @ w: (K, N) -> (M, N), tiled and pipelined.

    N / K are assumed to have nice factors (transformer projections always do);
    the token dimension M is padded to the tile size instead of ever falling
    back to an untiled full-extent block (VMEM-blowup safe on v7x).
    """
    cfg = _hw_config()
    tm = tm or cfg["tm"]
    tn = tn or cfg["tn"]
    tk = tk or cfg["tk"]

    M, K = x2d.shape
    K2, N = w.shape
    assert K == K2
    tn = _pick_tile(N, tn, 128)
    tk = _pick_tile(K, tk, 128)

    tm_eff = min(tm, _round_up(M, 8))
    m_pad = _round_up(M, tm_eff)
    if m_pad != M:
        x2d = jnp.pad(x2d, ((0, m_pad - M), (0, 0)))

    grid = (m_pad // tm_eff, N // tn, K // tk)
    out = pl.pallas_call(
        _matmul_kernel,
        out_shape=jax.ShapeDtypeStruct((m_pad, N), x2d.dtype),
        grid_spec=pltpu.PrefetchScalarGridSpec(
            num_scalar_prefetch=0,
            grid=grid,
            in_specs=[
                pl.BlockSpec((tm_eff, tk), lambda i, j, k: (i, k)),
                # TODO(synk): add pipeline_mode=pl.Buffered(3) on the weight
                # panel if profiling still shows exposed DMA at these tiles.
                pl.BlockSpec((tk, tn), lambda i, j, k: (k, j)),
            ],
            out_specs=pl.BlockSpec((tm_eff, tn), lambda i, j, k: (i, j)),
            scratch_shapes=[pltpu.VMEM((tm_eff, tn), jnp.float32)],
        ),
        compiler_params=pltpu.CompilerParams(
            dimension_semantics=("parallel", "parallel", "arbitrary"),
            vmem_limit_bytes=cfg["vmem_limit"],
        ),
    )(x2d, w)
    return out[:M] if m_pad != M else out


# ----------------------------------------------------------------------------
# Flash-style causal attention, GQA-group-batched, lane-dense output
# ----------------------------------------------------------------------------
def _flash_attn_kernel(q_ref, k_ref, v_ref, o_ref, m_sc, l_sc, acc_sc,
                       *, tq, tkv, g, d, approx_recip):
    qi = pl.program_id(2)
    ki = pl.program_id(3)

    @pl.when(ki == 0)
    def _():
        m_sc[...] = jnp.full(m_sc.shape, -jnp.inf, dtype=jnp.float32)
        l_sc[...] = jnp.zeros(l_sc.shape, dtype=jnp.float32)
        acc_sc[...] = jnp.zeros(acc_sc.shape, dtype=jnp.float32)

    q_first = qi * tq
    q_last = q_first + (tq - 1)
    k_first = ki * tkv
    k_last = k_first + (tkv - 1)

    def _update(apply_mask):
        # Q block is (1, g, tq, d): the whole GQA group, flattened to (g*tq, d)
        # so the score matmul has a g*tq M-dim on the MXU. Q is pre-scaled
        # (1/sqrt(d) folded into w_q), so no per-tile scaling here.
        q = q_ref[...].reshape(g * tq, d)
        k = k_ref[0, 0]                      # (tkv, d) — shared by the group
        v = v_ref[0, 0]

        s = jnp.dot(q, k.T, preferred_element_type=jnp.float32)   # (g*tq, tkv)

        if apply_mask:
            # Only diagonal blocks pay for the mask; row within the sequence is
            # q_first + (flat_row % tq) since the g heads share the same rows.
            r = jax.lax.broadcasted_iota(jnp.int32, (g * tq, tkv), 0) % tq
            c = jax.lax.broadcasted_iota(jnp.int32, (g * tq, tkv), 1)
            s = jnp.where(k_first + c <= q_first + r, s, _MASK_VALUE)

        # Online softmax, f32 math (matches softmax(..., dtype=float32)).
        m_prev = m_sc[...]
        m_new = jnp.maximum(m_prev, jnp.max(s, axis=-1, keepdims=True))
        alpha = jnp.exp(m_prev - m_new)
        p = jnp.exp(s - m_new)
        l_sc[...] = alpha * l_sc[...] + jnp.sum(p, axis=-1, keepdims=True)
        acc_sc[...] = alpha * acc_sc[...] + jnp.dot(
            p.astype(v.dtype), v, preferred_element_type=jnp.float32)
        m_sc[...] = m_new

    # Diagonal blocks (partially masked) and interior blocks (fully unmasked)
    # are mutually exclusive; blocks entirely above the diagonal run neither
    # (and their K/V DMA is elided by the clamped index_map).
    @pl.when(jnp.logical_and(k_first <= q_last, k_last > q_first))
    def _():
        _update(True)

    @pl.when(k_last <= q_first)
    def _():
        _update(False)

    @pl.when(ki == pl.num_programs(3) - 1)
    def _():
        inv_l = pl.reciprocal(l_sc[...], approx=approx_recip)
        out = acc_sc[...] * inv_l                      # (g*tq, d)
        # Lane-dense write: head i of the group goes to lanes [i*d, (i+1)*d).
        for i in range(g):
            o_ref[0, :, i * d:(i + 1) * d] = out[i * tq:(i + 1) * tq, :].astype(o_ref.dtype)


def attention_pallas(q, k, v, num_key_value_groups, *, tq=128, tkv=256):
    """
    q: (B, Hq, T, D)  k, v: (B, Hkv, T, D). Causal prefill (no cache).
    Q must already carry the 1/sqrt(D) scale (folded into w_q).
    Returns attention output in lane-dense (B, T, Hq*D) layout.
    Note: Hq*D per group (g*D) should be a multiple of 128 (or Hkv == 1) for
    aligned output blocks — true for real Mixtral (4*128) and the test config.
    """
    B, Hq, T, D = q.shape
    g = num_key_value_groups
    Hkv = Hq // g
    assert k.shape == (B, Hkv, T, D) and v.shape == (B, Hkv, T, D)

    # TODO(synk): pad T instead of the full-extent fallback for awkward lengths.
    tq = _pick_tile(T, tq, 8)
    tkv = _pick_tile(T, tkv, 128 if T % 128 == 0 else 8)
    nq, nkv = T // tq, T // tkv

    kernel = functools.partial(
        _flash_attn_kernel, tq=tq, tkv=tkv, g=g, d=D,
        approx_recip=(q.dtype != jnp.float32))

    def kv_index_map(b, h, qi, ki):
        # Clamp to the last causally-needed KV block for this Q tile: grid steps
        # above the diagonal resolve to the already-resident block -> no DMA.
        last_needed = ((qi + 1) * tq - 1) // tkv
        return (b, h, jnp.minimum(ki, last_needed), 0)

    cfg = _hw_config()
    return pl.pallas_call(
        kernel,
        out_shape=jax.ShapeDtypeStruct((B, T, Hq * D), q.dtype),
        grid_spec=pltpu.PrefetchScalarGridSpec(
            num_scalar_prefetch=0,
            grid=(B, Hkv, nq, nkv),
            in_specs=[
                # Whole GQA group of query heads per step.
                pl.BlockSpec((1, g, tq, D), lambda b, h, qi, ki: (b, h, qi, 0)),
                pl.BlockSpec((1, 1, tkv, D), kv_index_map),
                pl.BlockSpec((1, 1, tkv, D), kv_index_map),
            ],
            # Lane-dense output: (tq, g*D) slab straight into (B, T, Hq*D).
            out_specs=pl.BlockSpec((1, tq, g * D), lambda b, h, qi, ki: (b, qi, h)),
            scratch_shapes=[
                pltpu.VMEM((g * tq, 1), jnp.float32),   # m (running max)
                pltpu.VMEM((g * tq, 1), jnp.float32),   # l (running denom)
                pltpu.VMEM((g * tq, D), jnp.float32),   # acc
            ],
        ),
        compiler_params=pltpu.CompilerParams(
            dimension_semantics=("parallel", "parallel", "parallel", "arbitrary"),
            vmem_limit_bytes=cfg["vmem_limit"],
        ),
    )(q, k, v)


# ----------------------------------------------------------------------------
# RoPE (MixtralRotaryEmbedding + apply_rotary_pos_emb) — plain-JAX glue
# ----------------------------------------------------------------------------
def rope_cos_sin(seq_len, head_dim, base, dtype):
    inv_freq = 1.0 / (base ** (jnp.arange(0, head_dim, 2, dtype=jnp.float32) / head_dim))
    t = jnp.arange(seq_len, dtype=jnp.float32)
    freqs = jnp.outer(t, inv_freq)                       # (T, D/2)
    emb = jnp.concatenate([freqs, freqs], axis=-1)       # (T, D)
    return jnp.cos(emb).astype(dtype), jnp.sin(emb).astype(dtype)


def _rotate_half(x):
    x1, x2 = jnp.split(x, 2, axis=-1)
    return jnp.concatenate([-x2, x1], axis=-1)


def apply_rotary_pos_emb(q, k, cos, sin, position_ids):
    cos = cos[position_ids][:, None, :, :]   # (B, 1, T, D)
    sin = sin[position_ids][:, None, :, :]
    q_embed = q * cos + _rotate_half(q) * sin
    k_embed = k * cos + _rotate_half(k) * sin
    return q_embed, k_embed


# ----------------------------------------------------------------------------
# Weight preparation (hoisted out of the forward; call once per layer)
# ----------------------------------------------------------------------------
def prepare_attention_params(params, *, head_dim):
    """Fuse Q/K/V weights along N and fold 1/sqrt(head_dim) into w_q
    (RoPE is elementwise-linear in Q, so the scaling commutes with it)."""
    scale = 1.0 / math.sqrt(head_dim)
    w_qkv = jnp.concatenate(
        [params["w_q"] * scale, params["w_k"], params["w_v"]], axis=1)
    return {"w_qkv": w_qkv, "w_o": params["w_o"]}


# ----------------------------------------------------------------------------
# Forward (prefill path: past_key_value is None, causal mask)
# ----------------------------------------------------------------------------
def neuron_mixtral_attention_forward(
    hidden_states, position_ids, prepared_params,
    *, num_heads, num_key_value_heads, head_dim, rope_theta,
    attn_tq=128, attn_tkv=256,
):
    # TODO(synk): decode path (decomposed prior/active softmax over a KV cache,
    # speculation active_mask) is not reproduced; the flash kernel builds a
    # causal mask in-kernel, so arbitrary padding attention_masks are unsupported.
    # TODO(synk): fuse the QKV split + (0,2,1,3) transposes + RoPE below into a
    # single Pallas relayout pass (pltpu.roll for rotate_half) to cut the extra
    # HBM round trips over the activations.
    B, T, H = hidden_states.shape
    groups = num_heads // num_key_value_heads
    x2d = hidden_states.reshape(B * T, H)

    # Fused QKV projection (GroupQueryAttention_QKV, tp_degree=1, no bias).
    qkv = linear_pallas(x2d, prepared_params["w_qkv"])
    q_sz = num_heads * head_dim
    kv_sz = num_key_value_heads * head_dim
    Q = qkv[:, :q_sz].reshape(B, T, num_heads, head_dim)
    K = qkv[:, q_sz:q_sz + kv_sz].reshape(B, T, num_key_value_heads, head_dim)
    V = qkv[:, q_sz + kv_sz:].reshape(B, T, num_key_value_heads, head_dim)
    Q = jnp.transpose(Q, (0, 2, 1, 3))   # (B, Hq, T, D)  (Q already carries 1/sqrt(D))
    K = jnp.transpose(K, (0, 2, 1, 3))   # (B, Hkv, T, D)
    V = jnp.transpose(V, (0, 2, 1, 3))

    cos, sin = rope_cos_sin(T, head_dim, rope_theta, hidden_states.dtype)
    Q, K = apply_rotary_pos_emb(Q, K, cos, sin, position_ids)

    # Flash attention: output comes back lane-dense as (B, T, Hq*D), so the
    # reshape to (B*T, Hq*D) is free (no post-attention transpose).
    attn = attention_pallas(Q, K, V, groups, tq=attn_tq, tkv=attn_tkv)
    out = linear_pallas(attn.reshape(B * T, num_heads * head_dim),
                        prepared_params["w_o"]).reshape(B, T, H)

    past_key_value = (K, V)
    return out, past_key_value


# ----------------------------------------------------------------------------
# Pure-JAX reference (for correctness check; uses the original unfused weights)
# ----------------------------------------------------------------------------
def reference_forward(hidden_states, attention_mask, position_ids, params,
                      *, num_heads, num_key_value_heads, head_dim, rope_theta):
    B, T, H = hidden_states.shape
    groups = num_heads // num_key_value_heads
    x2d = hidden_states.reshape(B * T, H)
    Q = (x2d @ params["w_q"]).reshape(B, T, num_heads, head_dim).transpose(0, 2, 1, 3)
    K = (x2d @ params["w_k"]).reshape(B, T, num_key_value_heads, head_dim).transpose(0, 2, 1, 3)
    V = (x2d @ params["w_v"]).reshape(B, T, num_key_value_heads, head_dim).transpose(0, 2, 1, 3)
    cos, sin = rope_cos_sin(T, head_dim, rope_theta, hidden_states.dtype)
    Q, K = apply_rotary_pos_emb(Q, K, cos, sin, position_ids)
    K_act = jnp.repeat(K, groups, axis=1)
    V_act = jnp.repeat(V, groups, axis=1)
    scores = jnp.einsum("bhqd,bhkd->bhqk", Q, K_act) / math.sqrt(head_dim)
    scores = jnp.where(attention_mask != 0, scores, jnp.finfo(jnp.float32).min)
    p = jax.nn.softmax(scores.astype(jnp.float32), axis=-1).astype(Q.dtype)
    attn = jnp.einsum("bhqk,bhkd->bhqd", p, V_act)
    attn = attn.transpose(0, 2, 1, 3).reshape(B, T, num_heads * head_dim)
    return attn @ params["w_o"]


# ----------------------------------------------------------------------------
if __name__ == "__main__":
    # Small, module-consistent config (prefill, causal, GQA with 2 KV heads).
    # head_dim=64 keeps the per-group output slab (g*D = 128) lane-aligned,
    # matching real Mixtral's g*D = 4*128 = 512.
    B, T = 2, 16
    num_heads = 4
    num_key_value_heads = 2
    head_dim = 64
    hidden_size = num_heads * head_dim        # 256
    rope_theta = 1e6                          # Mixtral default
    dtype = jnp.float32

    key = jax.random.PRNGKey(0)
    kx, kq, kk, kv, ko = jax.random.split(key, 5)

    hidden_states = jax.random.normal(kx, (B, T, hidden_size), dtype=dtype)

    # Deterministic synthetic weights (stored as (in_features, out_features)).
    s = 1.0 / math.sqrt(hidden_size)
    params = {
        "w_q": jax.random.normal(kq, (hidden_size, num_heads * head_dim), dtype=dtype) * s,
        "w_k": jax.random.normal(kk, (hidden_size, num_key_value_heads * head_dim), dtype=dtype) * s,
        "w_v": jax.random.normal(kv, (hidden_size, num_key_value_heads * head_dim), dtype=dtype) * s,
        "w_o": jax.random.normal(ko, (num_heads * head_dim, hidden_size), dtype=dtype) * s,
    }
    prepared = prepare_attention_params(params, head_dim=head_dim)

    position_ids = jnp.broadcast_to(jnp.arange(T, dtype=jnp.int32)[None, :], (B, T))

    # Small attention tiles so the toy T=16 exercises the multi-block flash path
    # (nq=2, nkv=2): diagonal-masked blocks, interior unmasked blocks, and the
    # clamped (DMA-skipped) above-diagonal blocks.
    out, (k_cache, v_cache) = neuron_mixtral_attention_forward(
        hidden_states, position_ids, prepared,
        num_heads=num_heads, num_key_value_heads=num_key_value_heads,
        head_dim=head_dim, rope_theta=rope_theta,
        attn_tq=8, attn_tkv=8,
    )
    out = jax.block_until_ready(out)

    # Reference uses an explicit causal mask (same semantics as the module's
    # prefill path with is_causal=True).
    causal = (jnp.arange(T)[None, :] <= jnp.arange(T)[:, None]).astype(jnp.int32)
    attention_mask = jnp.broadcast_to(causal[None, None], (B, 1, T, T))
    ref = reference_forward(
        hidden_states, attention_mask, position_ids, params,
        num_heads=num_heads, num_key_value_heads=num_key_value_heads,
        head_dim=head_dim, rope_theta=rope_theta,
    )

    assert out.shape == (B, T, hidden_size)
    assert k_cache.shape == (B, num_key_value_heads, T, head_dim)
    assert v_cache.shape == (B, num_key_value_heads, T, head_dim)
    assert bool(jnp.all(jnp.isfinite(out)))
    assert bool(jnp.allclose(out, ref, atol=2e-2, rtol=2e-2))

    print("KERNEL_OK")
</pallas_src>

<mosaic_0001>
module attributes {stable_mosaic.version = 11 : i64} {
  func.func @_matmul_kernel(%arg0: i32, %arg1: i32, %arg2: i32, %arg3: memref<32x256xf32, #tpu.memory_space<vmem>>, %arg4: memref<256x512xf32, #tpu.memory_space<vmem>>, %arg5: memref<32x512xf32, #tpu.memory_space<vmem>>, %arg6: memref<32x512xf32, #tpu.memory_space<vmem>>) attributes {dimension_semantics = [#tpu.dimension_semantics<parallel>, #tpu.dimension_semantics<parallel>, #tpu.dimension_semantics<arbitrary>], iteration_bounds = array<i64: 1, 1, 1>, scalar_prefetch = 0 : i64, scratch_operands = 1 : i64, tpu.core_type = #tpu.core_type<tc>, window_params = [{transform_indices = @transform_0, window_bounds = array<i64: 32, 256>}, {transform_indices = @transform_1, window_bounds = array<i64: 256, 512>}, {transform_indices = @transform_2, window_bounds = array<i64: 32, 512>}]} {
    %c0_i32 = arith.constant 0 : i32
    %0 = arith.cmpi eq, %arg2, %c0_i32 : i32
    %1 = arith.extui %0 : i1 to i32
    %c0_i32_0 = arith.constant 0 : i32
    %2 = arith.cmpi ne, %1, %c0_i32_0 : i32
    scf.if %2 {
      %cst_10 = arith.constant 0.000000e+00 : f32
      %12 = vector.broadcast %cst_10 : f32 to vector<32x512xf32>
      %c0_11 = arith.constant 0 : index
      %c0_12 = arith.constant 0 : index
      %13 = vector.load %arg6[%c0_11, %c0_12] : memref<32x512xf32, #tpu.memory_space<vmem>>, vector<32x512xf32>
      tpu.vector_store %arg6[%c0_11, %c0_12], %12 {strides = array<i32>} : memref<32x512xf32, #tpu.memory_space<vmem>>, vector<32x512xf32>,
    } else {
    }
    %c0 = arith.constant 0 : index
    %c0_1 = arith.constant 0 : index
    %3 = vector.load %arg6[%c0, %c0_1] : memref<32x512xf32, #tpu.memory_space<vmem>>, vector<32x512xf32>
    %c0_2 = arith.constant 0 : index
    %c0_3 = arith.constant 0 : index
    %4 = vector.load %arg3[%c0_2, %c0_3] : memref<32x256xf32, #tpu.memory_space<vmem>>, vector<32x256xf32>
    %c0_4 = arith.constant 0 : index
    %c0_5 = arith.constant 0 : index
    %5 = vector.load %arg4[%c0_4, %c0_5] : memref<256x512xf32, #tpu.memory_space<vmem>>, vector<256x512xf32>
    %cst = arith.constant dense<0.000000e+00> : vector<32x512xf32>
    %6 = tpu.matmul %4, %5, %cst {dimension_numbers = #tpu.dot_dimension_numbers<[1], [0], [0], [1], [0, 0, 1, 1], [], []>} : vector<32x256xf32>, vector<256x512xf32>, vector<32x512xf32> -> vector<32x512xf32>
    %7 = arith.addf %3, %6 : vector<32x512xf32>
    %c0_6 = arith.constant 0 : index
    %c0_7 = arith.constant 0 : index
    %8 = vector.load %arg6[%c0_6, %c0_7] : memref<32x512xf32, #tpu.memory_space<vmem>>, vector<32x512xf32>
    tpu.vector_store %arg6[%c0_6, %c0_7], %7 {strides = array<i32>} : memref<32x512xf32, #tpu.memory_space<vmem>>, vector<32x512xf32>,
    %c0_i32_8 = arith.constant 0 : i32
    %9 = arith.cmpi eq, %arg2, %c0_i32_8 : i32
    %10 = arith.extui %9 : i1 to i32
    %c0_i32_9 = arith.constant 0 : i32
    %11 = arith.cmpi ne, %10, %c0_i32_9 : i32
    scf.if %11 {
      %c0_10 = arith.constant 0 : index
      %c0_11 = arith.constant 0 : index
      %12 = vector.load %arg6[%c0_10, %c0_11] : memref<32x512xf32, #tpu.memory_space<vmem>>, vector<32x512xf32>
      %c0_12 = arith.constant 0 : index
      %c0_13 = arith.constant 0 : index
      %13 = vector.load %arg5[%c0_12, %c0_13] : memref<32x512xf32, #tpu.memory_space<vmem>>, vector<32x512xf32>
      tpu.vector_store %arg5[%c0_12, %c0_13], %12 {strides = array<i32>} : memref<32x512xf32, #tpu.memory_space<vmem>>, vector<32x512xf32>,
    } else {
    }
    return
  }
  func.func @transform_0(%arg0: i32, %arg1: i32, %arg2: i32) -> (i32, i32) {
    %c0_i32 = arith.constant 0 : i32
    return %arg0, %arg2 : i32, i32
  }
  func.func @transform_1(%arg0: i32, %arg1: i32, %arg2: i32) -> (i32, i32) {
    %c0_i32 = arith.constant 0 : i32
    return %arg2, %arg1 : i32, i32
  }
  func.func @transform_2(%arg0: i32, %arg1: i32, %arg2: i32) -> (i32, i32) {
    %c0_i32 = arith.constant 0 : i32
    return %arg0, %arg1 : i32, i32
  }
}

</mosaic_0001>

<llo_original>
// kernel: tpu_custom_call.1
$region0: #{tpu_custom_call.1}
  #allocation0 [shape = 'u32[]', space=smem, size = 0x4, offset = 0x4, fixed_abs, tag = 'smem constant byte address 0x4 - core index']
  #allocation1 [shape = 'u32[144,128]{1,0:T(1,128)}', space=vmem, size = 0x12000, scoped, tag = 'internal scratch']
  #allocation2 [shape = 'f32[32,512]{1,0:T(8,128)}', space=vmem, size = 0x10000, scoped, tag = 'scratch operand']
  %s0 = inlined_call_operand.hbm [shape: f32[32,256], index: 0, kind: input, shape index: {}]
  %s1 = inlined_call_operand.hbm [shape: f32[256,512], index: 1, kind: input, shape index: {}]
  %s2 = inlined_call_operand.hbm [shape: f32[32,512], index: 2, kind: output, shape index: {}]
  %s3 = sld [smem:[#allocation0]]
  $region34: #{tpu_custom_call.1} parent=0
    _
  %s5 = ssub.s32 1, %s3
  %s6 = scalar_select 0, %s5, %s3
  $region1: #{tpu_custom_call.1} parent=0
    #allocation3 [shape = 'u8[32768]{0}', space=vmem, size = 0x8000, scoped, tag = 'input window, operand 0, single buffered']
    #allocation4 [shape = 's32[1]{0}', space=sflag, size = 0x4, scoped, tag = 'scoped memory for tpu_custom_call.1']
    #allocation5 [shape = 's32[1]{0}', space=sflag, size = 0x4, scoped, tag = 'scoped memory for tpu_custom_call.1']
    #allocation6 [shape = 'u8[524288]{0}', space=vmem, size = 0x80000, scoped, tag = 'input window, operand 1, single buffered']
    #allocation7 [shape = 's32[1]{0}', space=sflag, size = 0x4, scoped, tag = 'scoped memory for tpu_custom_call.1']
    #allocation8 [shape = 'u8[65536]{0}', space=vmem, size = 0x10000, scoped, tag = 'output window, operand 0, single buffered']
    %7 = vsyncpa [#allocation4], 0
    %8 = vsyncpa [#allocation7], 0
    %9 = vsyncpa [#allocation5], 0
    // Predicated region
    $region2: #{tpu_custom_call.1} parent=1 // pred_check
      _
    $region3: #{tpu_custom_call.1} parent=1 // pred_check_branch
      %11 = sbr.rel (0) target = $region5
    $region4: #{tpu_custom_call.1} parent=1 // pred_region
      %s13 = ssub.s32 1024, 1024
      %14 = vsyncadd [#allocation4], %s13
      %s15 = sshll.u32 [#allocation3], 4
      %s16 = int_to_ptr.vmem [resolvable:$true] %s15
      %21 = dma.hbm_to_vmem [thread:$0]  %s0, 1024, %s16, [#allocation4], 256, 256, 16
    $region5: #{tpu_custom_call.1} parent=1 // pred_fallthru
      _
    // Predicated region
    $region6: #{tpu_custom_call.1} parent=1 // pred_check
      _
    $region7: #{tpu_custom_call.1} parent=1 // pred_check_branch
      %23 = sbr.rel (0) target = $region9
    $region8: #{tpu_custom_call.1} parent=1 // pred_region
      %s25 = ssub.s32 16384, 16384
      %26 = vsyncadd [#allocation7], %s25
      %s27 = sshll.u32 [#allocation6], 4
      %s28 = int_to_ptr.vmem [resolvable:$true] %s27
      %33 = dma.hbm_to_vmem [thread:$0]  %s1, 16384, %s28, [#allocation7], 512, 512, 32
    $region9: #{tpu_custom_call.1} parent=1 // pred_fallthru
      _
    // Predicated region
    $region10: #{tpu_custom_call.1} parent=1 // pred_check
      _
    $region11: #{tpu_custom_call.1} parent=1 // pred_check_branch
      %35 = sbr.rel (0) target = $region13
    $region12: #{tpu_custom_call.1} parent=1 // pred_region
      %36 = dma.done [#allocation4], 1024
    $region13: #{tpu_custom_call.1} parent=1 // pred_fallthru
      _
    // Predicated region
    $region14: #{tpu_custom_call.1} parent=1 // pred_check
      _
    $region15: #{tpu_custom_call.1} parent=1 // pred_check_branch
      %38 = sbr.rel (0) target = $region17
    $region16: #{tpu_custom_call.1} parent=1 // pred_region
      %39 = dma.done [#allocation7], 16384
    $region17: #{tpu_custom_call.1} parent=1 // pred_fallthru
      _
    %p40 = scmp.eq.s32.totalorder 0, 0
    // Predicated region
    $region18: #{tpu_custom_call.1} parent=1 // pred_check
      %p41 = pneg %p40
    $region19: #{tpu_custom_call.1} parent=1 // pred_check_branch
      %43 = sbr.rel (%p41) target = $region21
    $region20: #{tpu_custom_call.1} parent=1 // pred_region
      %44 = vst [vmem:[#allocation2] sm:$0xff] 0.0
      %45 = vst [vmem:[#allocation2 + $0x8] sm:$0xff] 0.0
      %46 = vst [vmem:[#allocation2 + $0x10] sm:$0xff] 0.0
      %47 = vst [vmem:[#allocation2 + $0x18] sm:$0xff] 0.0
      %48 = vst [vmem:[#allocation2 + $0x20] sm:$0xff] 0.0
      %49 = vst [vmem:[#allocation2 + $0x28] sm:$0xff] 0.0
      %50 = vst [vmem:[#allocation2 + $0x30] sm:$0xff] 0.0
      %51 = vst [vmem:[#allocation2 + $0x38] sm:$0xff] 0.0
      %52 = vst [vmem:[#allocation2 + $0x40] sm:$0xff] 0.0
      %53 = vst [vmem:[#allocation2 + $0x48] sm:$0xff] 0.0
      %54 = vst [vmem:[#allocation2 + $0x50] sm:$0xff] 0.0
      %55 = vst [vmem:[#allocation2 + $0x58] sm:$0xff] 0.0
      %56 = vst [vmem:[#allocation2 + $0x60] sm:$0xff] 0.0
      %57 = vst [vmem:[#allocation2 + $0x68] sm:$0xff] 0.0
      %58 = vst [vmem:[#allocation2 + $0x70] sm:$0xff] 0.0
      %59 = vst [vmem:[#allocation2 + $0x78] sm:$0xff] 0.0
    $region21: #{tpu_custom_call.1} parent=1 // pred_fallthru
      _
    %v60 = vld [vmem:[#allocation2] sm:$0xff]
    %v61 = vld [vmem:[#allocation2 + $0x8] sm:$0xff]
    %v62 = vld [vmem:[#allocation2 + $0x10] sm:$0xff]
    %v63 = vld [vmem:[#allocation2 + $0x18] sm:$0xff]
    %v64 = vld [vmem:[#allocation2 + $0x20] sm:$0xff]
    %v65 = vld [vmem:[#allocation2 + $0x28] sm:$0xff]
    %v66 = vld [vmem:[#allocation2 + $0x30] sm:$0xff]
    %v67 = vld [vmem:[#allocation2 + $0x38] sm:$0xff]
    %v68 = vld [vmem:[#allocation2 + $0x40] sm:$0xff]
    %v69 = vld [vmem:[#allocation2 + $0x48] sm:$0xff]
    %v70 = vld [vmem:[#allocation2 + $0x50] sm:$0xff]
    %v71 = vld [vmem:[#allocation2 + $0x58] sm:$0xff]
    %v72 = vld [vmem:[#allocation2 + $0x60] sm:$0xff]
    %v73 = vld [vmem:[#allocation2 + $0x68] sm:$0xff]
    %v74 = vld [vmem:[#allocation2 + $0x70] sm:$0xff]
    %v75 = vld [vmem:[#allocation2 + $0x78] sm:$0xff]
    %v76 = vld [vmem:[#allocation3] sm:$0xff]
    %v77 = vld [vmem:[#allocation3 + $0x8] sm:$0xff]
    %v78 = vld [vmem:[#allocation3 + $0x10] sm:$0xff]
    %v79 = vld [vmem:[#allocation3 + $0x18] sm:$0xff]
    %v80 = vld [vmem:[#allocation3 + $0x20] sm:$0xff]
    %v81 = vld [vmem:[#allocation3 + $0x28] sm:$0xff]
    %v82 = vld [vmem:[#allocation3 + $0x30] sm:$0xff]
    %v83 = vld [vmem:[#allocation3 + $0x38] sm:$0xff]
    %v84 = vld [vmem:[#allocation6] sm:$0xff]
    %v85 = vld [vmem:[#allocation6 + $0x8] sm:$0xff]
    %v86 = vld [vmem:[#allocation6 + $0x10] sm:$0xff]
    %v87 = vld [vmem:[#allocation6 + $0x18] sm:$0xff]
    %v88 = vld [vmem:[#allocation6 + $0x20] sm:$0xff]
    %v89 = vld [vmem:[#allocation6 + $0x28] sm:$0xff]
    %v90 = vld [vmem:[#allocation6 + $0x30] sm:$0xff]
    %v91 = vld [vmem:[#allocation6 + $0x38] sm:$0xff]
    %v92 = vld [vmem:[#allocation6 + $0x40] sm:$0xff]
    %v93 = vld [vmem:[#allocation6 + $0x48] sm:$0xff]
    %v94 = vld [vmem:[#allocation6 + $0x50] sm:$0xff]
    %v95 = vld [vmem:[#allocation6 + $0x58] sm:$0xff]
    %v96 = vld [vmem:[#allocation6 + $0x60] sm:$0xff]
    %v97 = vld [vmem:[#allocation6 + $0x68] sm:$0xff]
    %v98 = vld [vmem:[#allocation6 + $0x70] sm:$0xff]
    %v99 = vld [vmem:[#allocation6 + $0x78] sm:$0xff]
    %v100 = vld [vmem:[#allocation6 + $0x80] sm:$0xff]
    %v101 = vld [vmem:[#allocation6 + $0x88] sm:$0xff]
    %v102 = vld [vmem:[#allocation6 + $0x90] sm:$0xff]
    %v103 = vld [vmem:[#allocation6 + $0x98] sm:$0xff]
    %v104 = vld [vmem:[#allocation6 + $0xa0] sm:$0xff]
    %v105 = vld [vmem:[#allocation6 + $0xa8] sm:$0xff]
    %v106 = vld [vmem:[#allocation6 + $0xb0] sm:$0xff]
    %v107 = vld [vmem:[#allocation6 + $0xb8] sm:$0xff]
    %v108 = vld [vmem:[#allocation6 + $0xc0] sm:$0xff]
    %v109 = vld [vmem:[#allocation6 + $0xc8] sm:$0xff]
    %v110 = vld [vmem:[#allocation6 + $0xd0] sm:$0xff]
    %v111 = vld [vmem:[#allocation6 + $0xd8] sm:$0xff]
    %v112 = vld [vmem:[#allocation6 + $0xe0] sm:$0xff]
    %v113 = vld [vmem:[#allocation6 + $0xe8] sm:$0xff]
    %v114 = vld [vmem:[#allocation6 + $0xf0] sm:$0xff]
    %v115 = vld [vmem:[#allocation6 + $0xf8] sm:$0xff]
    %v116 = vld [vmem:[#allocation6 + $0x100] sm:$0xff]
    %v117 = vld [vmem:[#allocation6 + $0x108] sm:$0xff]
    %v118 = vld [vmem:[#allocation6 + $0x110] sm:$0xff]
    %v119 = vld [vmem:[#allocation6 + $0x118] sm:$0xff]
    %v120 = vld [vmem:[#allocation6 + $0x120] sm:$0xff]
    %v121 = vld [vmem:[#allocation6 + $0x128] sm:$0xff]
    %v122 = vld [vmem:[#allocation6 + $0x130] sm:$0xff]
    %v123 = vld [vmem:[#allocation6 + $0x138] sm:$0xff]
    %v124 = vld [vmem:[#allocation6 + $0x140] sm:$0xff]
    %v125 = vld [vmem:[#allocation6 + $0x148] sm:$0xff]
    %v126 = vld [vmem:[#allocation6 + $0x150] sm:$0xff]
    %v127 = vld [vmem:[#allocation6 + $0x158] sm:$0xff]
    %v128 = vld [vmem:[#allocation6 + $0x160] sm:$0xff]
    %v129 = vld [vmem:[#allocation6 + $0x168] sm:$0xff]
    %v130 = vld [vmem:[#allocation6 + $0x170] sm:$0xff]
    %v131 = vld [vmem:[#allocation6 + $0x178] sm:$0xff]
    %v132 = vld [vmem:[#allocation6 + $0x180] sm:$0xff]
    %v133 = vld [vmem:[#allocation6 + $0x188] sm:$0xff]
    %v134 = vld [vmem:[#allocation6 + $0x190] sm:$0xff]
    %v135 = vld [vmem:[#allocation6 + $0x198] sm:$0xff]
    %v136 = vld [vmem:[#allocation6 + $0x1a0] sm:$0xff]
    %v137 = vld [vmem:[#allocation6 + $0x1a8] sm:$0xff]
    %v138 = vld [vmem:[#allocation6 + $0x1b0] sm:$0xff]
    %v139 = vld [vmem:[#allocation6 + $0x1b8] sm:$0xff]
    %v140 = vld [vmem:[#allocation6 + $0x1c0] sm:$0xff]
    %v141 = vld [vmem:[#allocation6 + $0x1c8] sm:$0xff]
    %v142 = vld [vmem:[#allocation6 + $0x1d0] sm:$0xff]
    %v143 = vld [vmem:[#allocation6 + $0x1d8] sm:$0xff]
    %v144 = vld [vmem:[#allocation6 + $0x1e0] sm:$0xff]
    %v145 = vld [vmem:[#allocation6 + $0x1e8] sm:$0xff]
    %v146 = vld [vmem:[#allocation6 + $0x1f0] sm:$0xff]
    %v147 = vld [vmem:[#allocation6 + $0x1f8] sm:$0xff]
    %v148 = vld [vmem:[#allocation6 + $0x200] sm:$0xff]
    %v149 = vld [vmem:[#allocation6 + $0x208] sm:$0xff]
    %v150 = vld [vmem:[#allocation6 + $0x210] sm:$0xff]
    %v151 = vld [vmem:[#allocation6 + $0x218] sm:$0xff]
    %v152 = vld [vmem:[#allocation6 + $0x220] sm:$0xff]
    %v153 = vld [vmem:[#allocation6 + $0x228] sm:$0xff]
    %v154 = vld [vmem:[#allocation6 + $0x230] sm:$0xff]
    %v155 = vld [vmem:[#allocation6 + $0x238] sm:$0xff]
    %v156 = vld [vmem:[#allocation6 + $0x240] sm:$0xff]
    %v157 = vld [vmem:[#allocation6 + $0x248] sm:$0xff]
    %v158 = vld [vmem:[#allocation6 + $0x250] sm:$0xff]
    %v159 = vld [vmem:[#allocation6 + $0x258] sm:$0xff]
    %v160 = vld [vmem:[#allocation6 + $0x260] sm:$0xff]
    %v161 = vld [vmem:[#allocation6 + $0x268] sm:$0xff]
    %v162 = vld [vmem:[#allocation6 + $0x270] sm:$0xff]
    %v163 = vld [vmem:[#allocation6 + $0x278] sm:$0xff]
    %v164 = vld [vmem:[#allocation6 + $0x280] sm:$0xff]
    %v165 = vld [vmem:[#allocation6 + $0x288] sm:$0xff]
    %v166 = vld [vmem:[#allocation6 + $0x290] sm:$0xff]
    %v167 = vld [vmem:[#allocation6 + $0x298] sm:$0xff]
    %v168 = vld [vmem:[#allocation6 + $0x2a0] sm:$0xff]
    %v169 = vld [vmem:[#allocation6 + $0x2a8] sm:$0xff]
    %v170 = vld [vmem:[#allocation6 + $0x2b0] sm:$0xff]
    %v171 = vld [vmem:[#allocation6 + $0x2b8] sm:$0xff]
    %v172 = vld [vmem:[#allocation6 + $0x2c0] sm:$0xff]
    %v173 = vld [vmem:[#allocation6 + $0x2c8] sm:$0xff]
    %v174 = vld [vmem:[#allocation6 + $0x2d0] sm:$0xff]
    %v175 = vld [vmem:[#allocation6 + $0x2d8] sm:$0xff]
    %v176 = vld [vmem:[#allocation6 + $0x2e0] sm:$0xff]
    %v177 = vld [vmem:[#allocation6 + $0x2e8] sm:$0xff]
    %v178 = vld [vmem:[#allocation6 + $0x2f0] sm:$0xff]
    %v179 = vld [vmem:[#allocation6 + $0x2f8] sm:$0xff]
    %v180 = vld [vmem:[#allocation6 + $0x300] sm:$0xff]
    %v181 = vld [vmem:[#allocation6 + $0x308] sm:$0xff]
    %v182 = vld [vmem:[#allocation6 + $0x310] sm:$0xff]
    %v183 = vld [vmem:[#allocation6 + $0x318] sm:$0xff]
    %v184 = vld [vmem:[#allocation6 + $0x320] sm:$0xff]
    %v185 = vld [vmem:[#allocation6 + $0x328] sm:$0xff]
    %v186 = vld [vmem:[#allocation6 + $0x330] sm:$0xff]
    %v187 = vld [vmem:[#allocation6 + $0x338] sm:$0xff]
    %v188 = vld [vmem:[#allocation6 + $0x340] sm:$0xff]
    %v189 = vld [vmem:[#allocation6 + $0x348] sm:$0xff]
    %v190 = vld [vmem:[#allocation6 + $0x350] sm:$0xff]
    %v191 = vld [vmem:[#allocation6 + $0x358] sm:$0xff]
    %v192 = vld [vmem:[#allocation6 + $0x360] sm:$0xff]
    %v193 = vld [vmem:[#allocation6 + $0x368] sm:$0xff]
    %v194 = vld [vmem:[#allocation6 + $0x370] sm:$0xff]
    %v195 = vld [vmem:[#allocation6 + $0x378] sm:$0xff]
    %v196 = vld [vmem:[#allocation6 + $0x380] sm:$0xff]
    %v197 = vld [vmem:[#allocation6 + $0x388] sm:$0xff]
    %v198 = vld [vmem:[#allocation6 + $0x390] sm:$0xff]
    %v199 = vld [vmem:[#allocation6 + $0x398] sm:$0xff]
    %v200 = vld [vmem:[#allocation6 + $0x3a0] sm:$0xff]
    %v201 = vld [vmem:[#allocation6 + $0x3a8] sm:$0xff]
    %v202 = vld [vmem:[#allocation6 + $0x3b0] sm:$0xff]
    %v203 = vld [vmem:[#allocation6 + $0x3b8] sm:$0xff]
    %v204 = vld [vmem:[#allocation6 + $0x3c0] sm:$0xff]
    %v205 = vld [vmem:[#allocation6 + $0x3c8] sm:$0xff]
    %v206 = vld [vmem:[#allocation6 + $0x3d0] sm:$0xff]
    %v207 = vld [vmem:[#allocation6 + $0x3d8] sm:$0xff]
    %v208 = vld [vmem:[#allocation6 + $0x3e0] sm:$0xff]
    %v209 = vld [vmem:[#allocation6 + $0x3e8] sm:$0xff]
    %v210 = vld [vmem:[#allocation6 + $0x3f0] sm:$0xff]
    %v211 = vld [vmem:[#allocation6 + $0x3f8] sm:$0xff]
    %212 = vmatprep.subr.mxu0 %v145
    %213 = vmatpush1.msra.mxu0 %v144
    %214 = vmatprep.subr.mxu0 %v141
    %215 = vmatpush1.msra.mxu0 %v140
    %216 = vmatprep.subr.mxu0 %v137
    %217 = vmatpush1.msra.mxu0 %v136
    %218 = vmatprep.subr.mxu0 %v133
    %219 = vmatpush1.msra.mxu0 %v132
    %220 = vmatprep.subr.mxu0 %v129
    %221 = vmatpush1.msra.mxu0 %v128
    %222 = vmatprep.subr.mxu0 %v125
    %223 = vmatpush1.msra.mxu0 %v124
    %224 = vmatprep.subr.mxu0 %v121
    %225 = vmatpush1.msra.mxu0 %v120
    %226 = vmatprep.subr.mxu0 %v117
    %227 = vmatpush1.msra.mxu0 %v116
    %228 = vmatprep.subr.mxu0 %v113
    %229 = vmatpush1.msra.mxu0 %v112
    %230 = vmatprep.subr.mxu0 %v109
    %231 = vmatpush1.msra.mxu0 %v108
    %232 = vmatprep.subr.mxu0 %v105
    %233 = vmatpush1.msra.mxu0 %v104
    %234 = vmatprep.subr.mxu0 %v101
    %235 = vmatpush1.msra.mxu0 %v100
    %236 = vmatprep.subr.mxu0 %v97
    %237 = vmatpush1.msra.mxu0 %v96
    %238 = vmatprep.subr.mxu0 %v93
    %239 = vmatpush1.msra.mxu0 %v92
    %240 = vmatprep.subr.mxu0 %v89
    %241 = vmatpush1.msra.mxu0 %v88
    %242 = vmatprep.subr.mxu0 %v85
    %243 = vmatpush1.msra.mxu0 %v84
    %244 = vmatprep.subr.mxu0 %v209
    %245 = vmatpush2.msra.mxu0 %v208
    %246 = vmatprep.subr.mxu0 %v205
    %247 = vmatpush2.msra.mxu0 %v204
    %248 = vmatprep.subr.mxu0 %v201
    %249 = vmatpush2.msra.mxu0 %v200
    %250 = vmatprep.subr.mxu0 %v197
    %251 = vmatpush2.msra.mxu0 %v196
    %252 = vmatprep.subr.mxu0 %v193
    %253 = vmatpush2.msra.mxu0 %v192
    %254 = vmatprep.subr.mxu0 %v189
    %255 = vmatpush2.msra.mxu0 %v188
    %256 = vmatprep.subr.mxu0 %v185
    %257 = vmatpush2.msra.mxu0 %v184
    %258 = vmatprep.subr.mxu0 %v181
    %259 = vmatpush2.msra.mxu0 %v180
    %260 = vmatprep.subr.mxu0 %v177
    %261 = vmatpush2.msra.mxu0 %v176
    %262 = vmatprep.subr.mxu0 %v173
    %263 = vmatpush2.msra.mxu0 %v172
    %264 = vmatprep.subr.mxu0 %v169
    %265 = vmatpush2.msra.mxu0 %v168
    %266 = vmatprep.subr.mxu0 %v165
    %267 = vmatpush2.msra.mxu0 %v164
    %268 = vmatprep.subr.mxu0 %v161
    %269 = vmatpush2.msra.mxu0 %v160
    %270 = vmatprep.subr.mxu0 %v157
    %271 = vmatpush2.msra.mxu0 %v156
    %272 = vmatprep.subr.mxu0 %v153
    %273 = vmatpush2.msra.mxu0 %v152
    %274 = vmatprep.subr.mxu0 %v149
    %275 = vmatpush2.msra.mxu0 %v148
    %276 = vmatprep.mubr.f32.mxu0 %v77
    %277 = vmatmul.mubr.f32.gmra.mxu0 %v76
    %v278 = vpop.f32.mrf.mxu0
    %v279 = vadd.f32 0.0, %v278
    %v280 = vpop.f32.mrf.mxu0
    %v281 = vadd.f32 0.0, %v280
    %282 = vmatprep.mubr.f32.mxu0 %v79
    %283 = vmatmul.mubr.f32.gmra.mxu0 %v78
    %v284 = vpop.f32.mrf.mxu0
    %v285 = vadd.f32 0.0, %v284
    %v286 = vpop.f32.mrf.mxu0
    %v287 = vadd.f32 0.0, %v286
    %288 = vmatprep.mubr.f32.mxu0 %v81
    %289 = vmatmul.mubr.f32.gmra.mxu0 %v80
    %v290 = vpop.f32.mrf.mxu0
    %v291 = vadd.f32 0.0, %v290
    %v292 = vpop.f32.mrf.mxu0
    %v293 = vadd.f32 0.0, %v292
    %294 = vmatprep.mubr.f32.mxu0 %v83
    %295 = vmatmul.mubr.f32.gmra.mxu0 %v82
    %v296 = vpop.f32.mrf.mxu0
    %v297 = vadd.f32 0.0, %v296
    %v298 = vpop.f32.mrf.mxu0
    %v299 = vadd.f32 0.0, %v298
    %300 = vdwg.mxu0
    %301 = vmatprep.subr.mxu0 %v147
    %302 = vmatpush1.msra.mxu0 %v146
    %303 = vmatprep.subr.mxu0 %v143
    %304 = vmatpush1.msra.mxu0 %v142
    %305 = vmatprep.subr.mxu0 %v139
    %306 = vmatpush1.msra.mxu0 %v138
    %307 = vmatprep.subr.mxu0 %v135
    %308 = vmatpush1.msra.mxu0 %v134
    %309 = vmatprep.subr.mxu0 %v131
    %310 = vmatpush1.msra.mxu0 %v130
    %311 = vmatprep.subr.mxu0 %v127
    %312 = vmatpush1.msra.mxu0 %v126
    %313 = vmatprep.subr.mxu0 %v123
    %314 = vmatpush1.msra.mxu0 %v122
    %315 = vmatprep.subr.mxu0 %v119
    %316 = vmatpush1.msra.mxu0 %v118
    %317 = vmatprep.subr.mxu0 %v115
    %318 = vmatpush1.msra.mxu0 %v114
    %319 = vmatprep.subr.mxu0 %v111
    %320 = vmatpush1.msra.mxu0 %v110
    %321 = vmatprep.subr.mxu0 %v107
    %322 = vmatpush1.msra.mxu0 %v106
    %323 = vmatprep.subr.mxu0 %v103
    %324 = vmatpush1.msra.mxu0 %v102
    %325 = vmatprep.subr.mxu0 %v99
    %326 = vmatpush1.msra.mxu0 %v98
    %327 = vmatprep.subr.mxu0 %v95
    %328 = vmatpush1.msra.mxu0 %v94
    %329 = vmatprep.subr.mxu0 %v91
    %330 = vmatpush1.msra.mxu0 %v90
    %331 = vmatprep.subr.mxu0 %v87
    %332 = vmatpush1.msra.mxu0 %v86
    %333 = vmatprep.subr.mxu0 %v211
    %334 = vmatpush2.msra.mxu0 %v210
    %335 = vmatprep.subr.mxu0 %v207
    %336 = vmatpush2.msra.mxu0 %v206
    %337 = vmatprep.subr.mxu0 %v203
    %338 = vmatpush2.msra.mxu0 %v202
    %339 = vmatprep.subr.mxu0 %v199
    %340 = vmatpush2.msra.mxu0 %v198
    %341 = vmatprep.subr.mxu0 %v195
    %342 = vmatpush2.msra.mxu0 %v194
    %343 = vmatprep.subr.mxu0 %v191
    %344 = vmatpush2.msra.mxu0 %v190
    %345 = vmatprep.subr.mxu0 %v187
    %346 = vmatpush2.msra.mxu0 %v186
    %347 = vmatprep.subr.mxu0 %v183
    %348 = vmatpush2.msra.mxu0 %v182
    %349 = vmatprep.subr.mxu0 %v179
    %350 = vmatpush2.msra.mxu0 %v178
    %351 = vmatprep.subr.mxu0 %v175
    %352 = vmatpush2.msra.mxu0 %v174
    %353 = vmatprep.subr.mxu0 %v171
    %354 = vmatpush2.msra.mxu0 %v170
    %355 = vmatprep.subr.mxu0 %v167
    %356 = vmatpush2.msra.mxu0 %v166
    %357 = vmatprep.subr.mxu0 %v163
    %358 = vmatpush2.msra.mxu0 %v162
    %359 = vmatprep.subr.mxu0 %v159
    %360 = vmatpush2.msra.mxu0 %v158
    %361 = vmatprep.subr.mxu0 %v155
    %362 = vmatpush2.msra.mxu0 %v154
    %363 = vmatprep.subr.mxu0 %v151
    %364 = vmatpush2.msra.mxu0 %v150
    %365 = vmatprep.mubr.f32.mxu0 %v77
    %366 = vmatmul.mubr.f32.gmra.mxu0 %v76
    %v367 = vpop.f32.mrf.mxu0
    %v368 = vadd.f32 0.0, %v367
    %v369 = vpop.f32.mrf.mxu0
    %v370 = vadd.f32 0.0, %v369
    %371 = vmatprep.mubr.f32.mxu0 %v79
    %372 = vmatmul.mubr.f32.gmra.mxu0 %v78
    %v373 = vpop.f32.mrf.mxu0
    %v374 = vadd.f32 0.0, %v373
    %v375 = vpop.f32.mrf.mxu0
    %v376 = vadd.f32 0.0, %v375
    %377 = vmatprep.mubr.f32.mxu0 %v81
    %378 = vmatmul.mubr.f32.gmra.mxu0 %v80
    %v379 = vpop.f32.mrf.mxu0
    %v380 = vadd.f32 0.0, %v379
    %v381 = vpop.f32.mrf.mxu0
    %v382 = vadd.f32 0.0, %v381
    %383 = vmatprep.mubr.f32.mxu0 %v83
    %384 = vmatmul.mubr.f32.gmra.mxu0 %v82
    %v385 = vpop.f32.mrf.mxu0
    %v386 = vadd.f32 0.0, %v385
    %v387 = vpop.f32.mrf.mxu0
    %v388 = vadd.f32 0.0, %v387
    %389 = vdwg.mxu0
    %v390 = vadd.f32 %v60, %v279
    %v391 = vadd.f32 %v61, %v281
    %v392 = vadd.f32 %v62, %v368
    %v393 = vadd.f32 %v63, %v370
    %v394 = vadd.f32 %v64, %v285
    %v395 = vadd.f32 %v65, %v287
    %v396 = vadd.f32 %v66, %v374
    %v397 = vadd.f32 %v67, %v376
    %v398 = vadd.f32 %v68, %v291
    %v399 = vadd.f32 %v69, %v293
    %v400 = vadd.f32 %v70, %v380
    %v401 = vadd.f32 %v71, %v382
    %v402 = vadd.f32 %v72, %v297
    %v403 = vadd.f32 %v73, %v299
    %v404 = vadd.f32 %v74, %v386
    %v405 = vadd.f32 %v75, %v388
    %406 = vst [vmem:[#allocation2] sm:$0xff] %v390
    %407 = vst [vmem:[#allocation2 + $0x8] sm:$0xff] %v391
    %408 = vst [vmem:[#allocation2 + $0x10] sm:$0xff] %v392
    %409 = vst [vmem:[#allocation2 + $0x18] sm:$0xff] %v393
    %410 = vst [vmem:[#allocation2 + $0x20] sm:$0xff] %v394
    %411 = vst [vmem:[#allocation2 + $0x28] sm:$0xff] %v395
    %412 = vst [vmem:[#allocation2 + $0x30] sm:$0xff] %v396
    %413 = vst [vmem:[#allocation2 + $0x38] sm:$0xff] %v397
    %414 = vst [vmem:[#allocation2 + $0x40] sm:$0xff] %v398
    %415 = vst [vmem:[#allocation2 + $0x48] sm:$0xff] %v399
    %416 = vst [vmem:[#allocation2 + $0x50] sm:$0xff] %v400
    %417 = vst [vmem:[#allocation2 + $0x58] sm:$0xff] %v401
    %418 = vst [vmem:[#allocation2 + $0x60] sm:$0xff] %v402
    %419 = vst [vmem:[#allocation2 + $0x68] sm:$0xff] %v403
    %420 = vst [vmem:[#allocation2 + $0x70] sm:$0xff] %v404
    %421 = vst [vmem:[#allocation2 + $0x78] sm:$0xff] %v405
    // Predicated region
    $region22: #{tpu_custom_call.1} parent=1 // pred_check
      %p422 = pneg %p40
    $region23: #{tpu_custom_call.1} parent=1 // pred_check_branch
      %424 = sbr.rel (%p422) target = $region25
    $region24: #{tpu_custom_call.1} parent=1 // pred_region
      %v425 = vld [vmem:[#allocation2] sm:$0xff]
      %v426 = vld [vmem:[#allocation2 + $0x8] sm:$0xff]
      %v427 = vld [vmem:[#allocation2 + $0x10] sm:$0xff]
      %v428 = vld [vmem:[#allocation2 + $0x18] sm:$0xff]
      %v429 = vld [vmem:[#allocation2 + $0x20] sm:$0xff]
      %v430 = vld [vmem:[#allocation2 + $0x28] sm:$0xff]
      %v431 = vld [vmem:[#allocation2 + $0x30] sm:$0xff]
      %v432 = vld [vmem:[#allocation2 + $0x38] sm:$0xff]
      %v433 = vld [vmem:[#allocation2 + $0x40] sm:$0xff]
      %v434 = vld [vmem:[#allocation2 + $0x48] sm:$0xff]
      %v435 = vld [vmem:[#allocation2 + $0x50] sm:$0xff]
      %v436 = vld [vmem:[#allocation2 + $0x58] sm:$0xff]
      %v437 = vld [vmem:[#allocation2 + $0x60] sm:$0xff]
      %v438 = vld [vmem:[#allocation2 + $0x68] sm:$0xff]
      %v439 = vld [vmem:[#allocation2 + $0x70] sm:$0xff]
      %v440 = vld [vmem:[#allocation2 + $0x78] sm:$0xff]
      %441 = vst [vmem:[#allocation8] sm:$0xff] %v425
      %442 = vst [vmem:[#allocation8 + $0x8] sm:$0xff] %v426
      %443 = vst [vmem:[#allocation8 + $0x10] sm:$0xff] %v427
      %444 = vst [vmem:[#allocation8 + $0x18] sm:$0xff] %v428
      %445 = vst [vmem:[#allocation8 + $0x20] sm:$0xff] %v429
      %446 = vst [vmem:[#allocation8 + $0x28] sm:$0xff] %v430
      %447 = vst [vmem:[#allocation8 + $0x30] sm:$0xff] %v431
      %448 = vst [vmem:[#allocation8 + $0x38] sm:$0xff] %v432
      %449 = vst [vmem:[#allocation8 + $0x40] sm:$0xff] %v433
      %450 = vst [vmem:[#allocation8 + $0x48] sm:$0xff] %v434
      %451 = vst [vmem:[#allocation8 + $0x50] sm:$0xff] %v435
      %452 = vst [vmem:[#allocation8 + $0x58] sm:$0xff] %v436
      %453 = vst [vmem:[#allocation8 + $0x60] sm:$0xff] %v437
      %454 = vst [vmem:[#allocation8 + $0x68] sm:$0xff] %v438
      %455 = vst [vmem:[#allocation8 + $0x70] sm:$0xff] %v439
      %456 = vst [vmem:[#allocation8 + $0x78] sm:$0xff] %v440
    $region25: #{tpu_custom_call.1} parent=1 // pred_fallthru
      _
    // Predicated region
    $region26: #{tpu_custom_call.1} parent=1 // pred_check
      _
    $region27: #{tpu_custom_call.1} parent=1 // pred_check_branch
      %458 = sbr.rel (0) target = $region29
    $region28: #{tpu_custom_call.1} parent=1 // pred_region
      %s460 = ssub.s32 2048, 2048
      %461 = vsyncadd [#allocation5], %s460
      %s462 = sshll.u32 [#allocation8], 4
      %s463 = int_to_ptr.vmem [resolvable:$true] %s462
      %468 = dma.vmem_to_hbm [thread:$0]  %s463, 2048, %s2, [#allocation5], 512, 512, 32
    $region29: #{tpu_custom_call.1} parent=1 // pred_fallthru
      _
    // Predicated region
    $region30: #{tpu_custom_call.1} parent=1 // pred_check
      _
    $region31: #{tpu_custom_call.1} parent=1 // pred_check_branch
      %470 = sbr.rel (0) target = $region33
    $region32: #{tpu_custom_call.1} parent=1 // pred_region
      %471 = dma.done [#allocation5], 2048
    $region33: #{tpu_custom_call.1} parent=1 // pred_fallthru
      _
    %472 = vsyncpa [#allocation4], 1
    %473 = vsyncpa [#allocation7], 1
    %474 = vsyncpa [#allocation5], 1

</llo_original>
